<compile_context>
chip_gen: v5e
topology: v5e:2x2
jax: 0.10.0
libtpu: 0.0.40
codegen_flags: <defaults>
</compile_context>

<pallas_src>
import functools
import math

import jax
import jax.numpy as jnp
from jax.experimental import pallas as pl
from jax.experimental.pallas import tpu as pltpu

# 48 MiB: headroom on v7x (64 MiB physical per TensorCore), generous on v5e/v6e.
_VMEM_LIMIT = 48 * 1024 * 1024


# ---------------------------------------------------------------------------
# Helpers
# ---------------------------------------------------------------------------
def _row_tile(tokens, dtype, tile_m):
    """Sublane-aligned row tile; shrink for small token counts to limit padding."""
    sub = 16 if jnp.dtype(dtype).itemsize < 4 else 8
    tile_m = max(sub, ((tile_m + sub - 1) // sub) * sub)
    return min(tile_m, ((tokens + sub - 1) // sub) * sub)


def _pad_rows(x, tile):
    pad = (-x.shape[0]) % tile
    if pad:
        x = jnp.pad(x, ((0, pad), (0, 0)))
    return x


def _weight_spec(shape, single_buffer):
    """Resident weight (constant index_map).  Single-buffer it to save VMEM."""
    idx = lambda i: (0,) * len(shape)
    if single_buffer:
        return pl.BlockSpec(shape, idx, pipeline_mode=pl.Buffered(1))
    return pl.BlockSpec(shape, idx)


# ---------------------------------------------------------------------------
# Kernel 1: plain dense  y = x @ w + b   (Q projection)
# ---------------------------------------------------------------------------
def _dense_kernel(x_ref, w_ref, b_ref, o_ref):
    # Operands stay in their input dtype (bf16-friendly); accumulate in f32.
    y = jnp.dot(x_ref[...], w_ref[...], preferred_element_type=jnp.float32)
    y = y + b_ref[...].astype(jnp.float32)
    o_ref[...] = y.astype(o_ref.dtype)


def dense(x, w, b, *, tile_m=512, single_buffer_weight=True):
    """x: [tokens, K], w: [K, N] (PyTorch nn.Linear weight pre-transposed), b: [N]."""
    tokens, k_in = x.shape
    k_w, n_out = w.shape
    assert k_in == k_w
    tile = _row_tile(tokens, x.dtype, tile_m)
    xp = _pad_rows(x, tile)
    grid = (pl.cdiv(xp.shape[0], tile),)

    out = pl.pallas_call(
        _dense_kernel,
        out_shape=jax.ShapeDtypeStruct((xp.shape[0], n_out), x.dtype),
        grid_spec=pltpu.PrefetchScalarGridSpec(
            num_scalar_prefetch=0,
            grid=grid,
            in_specs=[
                pl.BlockSpec((tile, k_in), lambda i: (i, 0)),       # activations tile
                _weight_spec((k_in, n_out), single_buffer_weight),  # resident weight
                pl.BlockSpec((1, n_out), lambda i: (0, 0)),         # bias
            ],
            out_specs=pl.BlockSpec((tile, n_out), lambda i: (i, 0)),
        ),
        compiler_params=pltpu.CompilerParams(
            dimension_semantics=("parallel",),
            vmem_limit_bytes=_VMEM_LIMIT),
    )(xp, w, b.reshape(1, n_out))
    return out[:tokens]


# ---------------------------------------------------------------------------
# Kernel 2: fused K/V projection  (k, v) = (x @ Wk + bk, x @ Wv + bv)
#   One pass over the encoder activations, two resident weights, two outputs.
#   No per-call weight concat, no post-hoc column slicing.
# ---------------------------------------------------------------------------
def _dense_kv_kernel(x_ref, wk_ref, bk_ref, wv_ref, bv_ref, k_ref, v_ref):
    x = x_ref[...]
    k = jnp.dot(x, wk_ref[...], preferred_element_type=jnp.float32)
    k_ref[...] = (k + bk_ref[...].astype(jnp.float32)).astype(k_ref.dtype)
    v = jnp.dot(x, wv_ref[...], preferred_element_type=jnp.float32)
    v_ref[...] = (v + bv_ref[...].astype(jnp.float32)).astype(v_ref.dtype)


def dense_kv(x, wk, bk, wv, bv, *, tile_m=512, single_buffer_weight=True):
    """x: [tokens, K]; wk, wv: [K, N]; bk, bv: [N].  Returns (k, v)."""
    tokens, k_in = x.shape
    n_out = wk.shape[1]
    tile = _row_tile(tokens, x.dtype, tile_m)
    xp = _pad_rows(x, tile)
    grid = (pl.cdiv(xp.shape[0], tile),)

    k_out, v_out = pl.pallas_call(
        _dense_kv_kernel,
        out_shape=(jax.ShapeDtypeStruct((xp.shape[0], n_out), x.dtype),
                   jax.ShapeDtypeStruct((xp.shape[0], n_out), x.dtype)),
        grid_spec=pltpu.PrefetchScalarGridSpec(
            num_scalar_prefetch=0,
            grid=grid,
            in_specs=[
                pl.BlockSpec((tile, k_in), lambda i: (i, 0)),       # encoder activations
                _weight_spec((k_in, n_out), single_buffer_weight),  # Wk (resident)
                pl.BlockSpec((1, n_out), lambda i: (0, 0)),         # bk
                _weight_spec((k_in, n_out), single_buffer_weight),  # Wv (resident)
                pl.BlockSpec((1, n_out), lambda i: (0, 0)),         # bv
            ],
            out_specs=[pl.BlockSpec((tile, n_out), lambda i: (i, 0)),
                       pl.BlockSpec((tile, n_out), lambda i: (i, 0))],
        ),
        compiler_params=pltpu.CompilerParams(
            dimension_semantics=("parallel",),
            vmem_limit_bytes=_VMEM_LIMIT),
    )(xp, wk, bk.reshape(1, n_out), wv, bv.reshape(1, n_out))
    return k_out[:tokens], v_out[:tokens]


# ---------------------------------------------------------------------------
# Kernel 3: attention core — one grid step per batch element, all heads per step.
#   q/k/v arrive in their natural [tokens, hidden] projection layout (heads are
#   contiguous column slices), the output is a single lane-dense (Sq, hidden) store.
# ---------------------------------------------------------------------------
def _attention_kernel(q_ref, k_ref, v_ref, m_ref, o_ref, *, num_heads, scale):
    q = q_ref[0]                              # (Sq, hidden), input dtype
    k = k_ref[0]                              # (Sk, hidden)
    v = v_ref[0]                              # (Sk, hidden)
    mask = m_ref[0].astype(jnp.float32)       # (1, Sk), additive mask (row-broadcast)
    dh = q.shape[-1] // num_heads

    ctx_heads = []
    for h in range(num_heads):                # unrolled at trace time (static H)
        lo = h * dh
        qh = q[:, lo:lo + dh]                 # (Sq, Dh) — static column slice
        kh = k[:, lo:lo + dh]                 # (Sk, Dh)
        vh = v[:, lo:lo + dh]                 # (Sk, Dh)

        # scores = q_h @ k_h^T (contract head dim), f32 accumulation on the MXU.
        s = jax.lax.dot_general(qh, kh, (((1,), (1,)), ((), ())),
                                preferred_element_type=jnp.float32)
        s = s * scale + mask

        # numerically stable softmax (f32); normalize with one reciprocal per row
        # instead of a full-tile divide.
        s_max = jnp.max(s, axis=-1, keepdims=True)
        p = jnp.exp(s - s_max)
        denom = jnp.sum(p, axis=-1, keepdims=True)
        p = p * pl.reciprocal(denom)
        # TODO(synk): attention-probs dropout & head_mask not implemented (eval mode).

        ctx_heads.append(jnp.dot(p.astype(vh.dtype), vh,
                                 preferred_element_type=jnp.float32))

    ctx = jnp.concatenate(ctx_heads, axis=-1)          # (Sq, hidden), lane-dense
    o_ref[0] = ctx.astype(o_ref.dtype)


def attention_core(q, k, v, mask, *, num_heads, scale):
    """q: [B, Sq, hidden]; k, v: [B, Sk, hidden]; mask: additive [B, Sk]."""
    B, Sq, hidden = q.shape
    Sk = k.shape[1]
    mask3 = mask.reshape(B, 1, Sk)
    kern = functools.partial(_attention_kernel, num_heads=num_heads, scale=scale)
    # TODO(synk): for very long encoder sequences (Sk >~ 2-4K) add an Sk grid axis
    # with an online-softmax accumulator instead of materializing (Sq, Sk) at once.
    return pl.pallas_call(
        kern,
        out_shape=jax.ShapeDtypeStruct((B, Sq, hidden), q.dtype),
        grid_spec=pltpu.PrefetchScalarGridSpec(
            num_scalar_prefetch=0,
            grid=(B,),
            in_specs=[
                pl.BlockSpec((1, Sq, hidden), lambda b: (b, 0, 0)),
                pl.BlockSpec((1, Sk, hidden), lambda b: (b, 0, 0)),
                pl.BlockSpec((1, Sk, hidden), lambda b: (b, 0, 0)),
                pl.BlockSpec((1, 1, Sk), lambda b: (b, 0, 0)),
            ],
            out_specs=pl.BlockSpec((1, Sq, hidden), lambda b: (b, 0, 0)),
        ),
        compiler_params=pltpu.CompilerParams(
            dimension_semantics=("parallel",),
            vmem_limit_bytes=_VMEM_LIMIT),
    )(q, k, v, mask3)


# ---------------------------------------------------------------------------
# Kernel 4: fused SelfOutput  y = LayerNorm(x @ Wo + bo + residual)
# ---------------------------------------------------------------------------
def _self_output_kernel(x_ref, res_ref, w_ref, b_ref, gamma_ref, beta_ref, o_ref, *, eps):
    # MXU matmul in the input dtype with f32 accumulation (no operand upcast).
    y = jnp.dot(x_ref[...], w_ref[...], preferred_element_type=jnp.float32)
    y = y + b_ref[...].astype(jnp.float32)
    # TODO(synk): hidden-dropout not implemented (eval => identity).
    y = y + res_ref[...].astype(jnp.float32)

    # LayerNorm over hidden (last) axis; reductions go to the XLU, rsqrt to the EUP.
    h = y.shape[-1]
    mean = jnp.sum(y, axis=-1, keepdims=True) * (1.0 / h)
    centered = y - mean
    var = jnp.sum(centered * centered, axis=-1, keepdims=True) * (1.0 / h)
    inv = jax.lax.rsqrt(var + eps)
    out = centered * inv * gamma_ref[...].astype(jnp.float32) \
        + beta_ref[...].astype(jnp.float32)
    o_ref[...] = out.astype(o_ref.dtype)


def self_output(x, residual, w, b, gamma, beta, *, eps=1e-12, tile_m=512,
                single_buffer_weight=True):
    tokens, hidden = x.shape
    tile = _row_tile(tokens, x.dtype, tile_m)
    xp = _pad_rows(x, tile)
    rp = _pad_rows(residual, tile)
    grid = (pl.cdiv(xp.shape[0], tile),)

    kernel = functools.partial(_self_output_kernel, eps=eps)
    out = pl.pallas_call(
        kernel,
        out_shape=jax.ShapeDtypeStruct(xp.shape, x.dtype),
        grid_spec=pltpu.PrefetchScalarGridSpec(
            num_scalar_prefetch=0,
            grid=grid,
            in_specs=[
                pl.BlockSpec((tile, hidden), lambda i: (i, 0)),        # attention output
                pl.BlockSpec((tile, hidden), lambda i: (i, 0)),        # residual
                _weight_spec((hidden, hidden), single_buffer_weight),  # Wo (resident)
                pl.BlockSpec((1, hidden), lambda i: (0, 0)),           # bo
                pl.BlockSpec((1, hidden), lambda i: (0, 0)),           # LN gamma
                pl.BlockSpec((1, hidden), lambda i: (0, 0)),           # LN beta
            ],
            out_specs=pl.BlockSpec((tile, hidden), lambda i: (i, 0)),
        ),
        compiler_params=pltpu.CompilerParams(
            dimension_semantics=("parallel",),
            vmem_limit_bytes=_VMEM_LIMIT),
    )(xp, rp, w, b.reshape(1, hidden), gamma.reshape(1, hidden), beta.reshape(1, hidden))
    return out[:tokens]


# ---------------------------------------------------------------------------
# Full CrossAttention forward (eval mode)
# ---------------------------------------------------------------------------
def cross_attention_forward(hidden_states, encoder_hidden_states, encoder_attention_mask,
                            params, *, num_heads, eps=1e-12, tile_m=512,
                            single_buffer_weights=True):
    """hidden_states: [B,Sq,H]; encoder_hidden_states: [B,Sk,Hc]; mask: additive [B,Sk].

    Weights in `params` are stored as [in, out] (i.e. PyTorch nn.Linear weight
    transposed) so every kernel computes x @ w.
    """
    B, Sq, hidden = hidden_states.shape
    _, Sk, ctx_hidden = encoder_hidden_states.shape
    dh = hidden // num_heads

    x2d = hidden_states.reshape(B * Sq, hidden)
    e2d = encoder_hidden_states.reshape(B * Sk, ctx_hidden)

    # Projections: Q from decoder hidden states; K and V fused in one kernel that
    # reads the encoder activations once (no weight concat per call).
    q2d = dense(x2d, params["wq"], params["bq"], tile_m=tile_m,
                single_buffer_weight=single_buffer_weights)
    k2d, v2d = dense_kv(e2d, params["wk"], params["bk"], params["wv"], params["bv"],
                        tile_m=tile_m, single_buffer_weight=single_buffer_weights)

    # Heads are contiguous column slices of the projection outputs, so no
    # (B,S,H,dh)<->(B,H,S,dh) HBM transposes: these reshapes are metadata-only.
    q3 = q2d.reshape(B, Sq, hidden)
    k3 = k2d.reshape(B, Sk, hidden)
    v3 = v2d.reshape(B, Sk, hidden)

    if encoder_attention_mask is None:
        mask = jnp.zeros((B, Sk), dtype=jnp.float32)
    else:
        # Expected to be an already-extended additive mask (0 = attend, -1e9 = masked),
        # exactly as the PyTorch module adds it to the scores.
        mask = encoder_attention_mask.astype(jnp.float32).reshape(B, Sk)

    ctx = attention_core(q3, k3, v3, mask, num_heads=num_heads,
                         scale=1.0 / math.sqrt(dh))
    ctx2d = ctx.reshape(B * Sq, hidden)      # already lane-dense, metadata reshape only

    out2d = self_output(ctx2d, x2d, params["wo"], params["bo"],
                        params["gamma"], params["beta"], eps=eps, tile_m=tile_m,
                        single_buffer_weight=single_buffer_weights)
    # TODO(synk): output_attentions=True path (returning the probs) not implemented.
    return out2d.reshape(B, Sq, hidden)


# ---------------------------------------------------------------------------
# Pure-JAX reference
# ---------------------------------------------------------------------------
def reference_forward(hidden_states, encoder_hidden_states, mask, params, *, num_heads, eps):
    B, Sq, hidden = hidden_states.shape
    _, Sk, _ = encoder_hidden_states.shape
    dh = hidden // num_heads

    q = hidden_states @ params["wq"] + params["bq"]
    k = encoder_hidden_states @ params["wk"] + params["bk"]
    v = encoder_hidden_states @ params["wv"] + params["bv"]

    def heads(t, s):
        return t.reshape(B, s, num_heads, dh).transpose(0, 2, 1, 3)

    qh, kh, vh = heads(q, Sq), heads(k, Sk), heads(v, Sk)
    scores = jnp.einsum("bhqd,bhkd->bhqk", qh, kh) / math.sqrt(dh)
    scores = scores + mask.astype(jnp.float32)[:, None, None, :]
    probs = jax.nn.softmax(scores, axis=-1)
    ctx = jnp.einsum("bhqk,bhkd->bhqd", probs, vh)
    ctx = ctx.transpose(0, 2, 1, 3).reshape(B, Sq, hidden)

    y = ctx @ params["wo"] + params["bo"] + hidden_states
    mean = y.mean(-1, keepdims=True)
    var = ((y - mean) ** 2).mean(-1, keepdims=True)
    return (y - mean) * jax.lax.rsqrt(var + eps) * params["gamma"] + params["beta"]


if __name__ == "__main__":
    batch, seq, enc_seq = 2, 8, 12
    hidden, ctx_hidden, num_heads = 32, 48, 4
    eps = 1e-12

    key = jax.random.PRNGKey(0)
    ks = jax.random.split(key, 12)

    hidden_states = jax.random.normal(ks[0], (batch, seq, hidden), jnp.float32)
    encoder_hidden_states = jax.random.normal(ks[1], (batch, enc_seq, ctx_hidden), jnp.float32)
    # BERT-style additive mask: 0 = attend, -1e9 = masked encoder positions.
    pad_cols = jnp.arange(enc_seq) >= (enc_seq - 2)
    encoder_attention_mask = jnp.broadcast_to(
        jnp.where(pad_cols, -1e9, 0.0).astype(jnp.float32), (batch, enc_seq))

    std = 0.1
    params = {
        "wq": std * jax.random.normal(ks[2], (hidden, hidden), jnp.float32),
        "bq": 0.05 * jax.random.normal(ks[3], (hidden,), jnp.float32),
        "wk": std * jax.random.normal(ks[4], (ctx_hidden, hidden), jnp.float32),
        "bk": 0.05 * jax.random.normal(ks[5], (hidden,), jnp.float32),
        "wv": std * jax.random.normal(ks[6], (ctx_hidden, hidden), jnp.float32),
        "bv": 0.05 * jax.random.normal(ks[7], (hidden,), jnp.float32),
        "wo": std * jax.random.normal(ks[8], (hidden, hidden), jnp.float32),
        "bo": 0.05 * jax.random.normal(ks[9], (hidden,), jnp.float32),
        "gamma": jnp.ones((hidden,), jnp.float32)
                 + 0.01 * jax.random.normal(ks[10], (hidden,), jnp.float32),
        "beta": 0.01 * jax.random.normal(ks[11], (hidden,), jnp.float32),
    }

    fwd_args = (hidden_states, encoder_hidden_states, encoder_attention_mask, params)
    fwd_kwargs = dict(num_heads=num_heads, eps=eps, tile_m=512)
    try:
        out = cross_attention_forward(*fwd_args, single_buffer_weights=True, **fwd_kwargs)
        out = jax.block_until_ready(out)
    except Exception:
        # Fallback for environments whose Pallas version rejects pl.Buffered(1).
        out = cross_attention_forward(*fwd_args, single_buffer_weights=False, **fwd_kwargs)
        out = jax.block_until_ready(out)

    with jax.default_matmul_precision("highest"):
        ref = reference_forward(hidden_states, encoder_hidden_states,
                                encoder_attention_mask, params,
                                num_heads=num_heads, eps=eps)
    ref = jax.block_until_ready(ref)

    assert out.shape == ref.shape
    assert jnp.allclose(out, ref, atol=2e-4, rtol=2e-4), "mismatch vs reference"

    print("KERNEL_OK")
</pallas_src>

<mosaic_0001>
module attributes {stable_mosaic.version = 11 : i64} {
  func.func @_dense_kernel(%arg0: i32, %arg1: memref<16x32xf32, #tpu.memory_space<vmem>>, %arg2: memref<32x32xf32, #tpu.memory_space<vmem>>, %arg3: memref<1x32xf32, #tpu.memory_space<vmem>>, %arg4: memref<16x32xf32, #tpu.memory_space<vmem>>) attributes {dimension_semantics = [#tpu.dimension_semantics<parallel>], iteration_bounds = array<i64: 1>, scalar_prefetch = 0 : i64, scratch_operands = 0 : i64, tpu.core_type = #tpu.core_type<tc>, window_params = [{transform_indices = @transform_0, window_bounds = array<i64: 16, 32>}, {pipeline_mode = #tpu.pipeline_mode<synchronous>, transform_indices = @transform_1, window_bounds = array<i64: 32, 32>}, {pipeline_mode = #tpu.pipeline_mode<synchronous>, transform_indices = @transform_2, window_bounds = array<i64: 1, 32>}, {transform_indices = @transform_3, window_bounds = array<i64: 16, 32>}]} {
    %c0 = arith.constant 0 : index
    %c0_0 = arith.constant 0 : index
    %0 = vector.load %arg1[%c0, %c0_0] : memref<16x32xf32, #tpu.memory_space<vmem>>, vector<16x32xf32>
    %c0_1 = arith.constant 0 : index
    %c0_2 = arith.constant 0 : index
    %1 = vector.load %arg2[%c0_1, %c0_2] : memref<32x32xf32, #tpu.memory_space<vmem>>, vector<32x32xf32>
    %cst = arith.constant dense<0.000000e+00> : vector<16x32xf32>
    %2 = tpu.matmul %0, %1, %cst {dimension_numbers = #tpu.dot_dimension_numbers<[1], [0], [0], [1], [0, 0, 1, 1], [], []>} : vector<16x32xf32>, vector<32x32xf32>, vector<16x32xf32> -> vector<16x32xf32>
    %c0_3 = arith.constant 0 : index
    %c0_4 = arith.constant 0 : index
    %3 = vector.load %arg3[%c0_3, %c0_4] : memref<1x32xf32, #tpu.memory_space<vmem>>, vector<1x32xf32>
    %4 = vector.broadcast %3 : vector<1x32xf32> to vector<16x32xf32>
    %5 = arith.addf %2, %4 : vector<16x32xf32>
    %c0_5 = arith.constant 0 : index
    %c0_6 = arith.constant 0 : index
    %6 = vector.load %arg4[%c0_5, %c0_6] : memref<16x32xf32, #tpu.memory_space<vmem>>, vector<16x32xf32>
    tpu.vector_store %arg4[%c0_5, %c0_6], %5 {strides = array<i32>} : memref<16x32xf32, #tpu.memory_space<vmem>>, vector<16x32xf32>,
    return
  }
  func.func @transform_0(%arg0: i32) -> (i32, i32) {
    %c0_i32 = arith.constant 0 : i32
    %c0_i32_0 = arith.constant 0 : i32
    return %arg0, %c0_i32 : i32, i32
  }
  func.func @transform_1(%arg0: i32) -> (i32, i32) {
    %c0_i32 = arith.constant 0 : i32
    %c0_i32_0 = arith.constant 0 : i32
    %c0_i32_1 = arith.constant 0 : i32
    return %c0_i32, %c0_i32_0 : i32, i32
  }
  func.func @transform_2(%arg0: i32) -> (i32, i32) {
    %c0_i32 = arith.constant 0 : i32
    %c0_i32_0 = arith.constant 0 : i32
    %c0_i32_1 = arith.constant 0 : i32
    return %c0_i32, %c0_i32_0 : i32, i32
  }
  func.func @transform_3(%arg0: i32) -> (i32, i32) {
    %c0_i32 = arith.constant 0 : i32
    %c0_i32_0 = arith.constant 0 : i32
    return %arg0, %c0_i32 : i32, i32
  }
}

module attributes {stable_mosaic.version = 11 : i64} {
  func.func @_dense_kernel(%arg0: i32, %arg1: memref<16x32xf32, #tpu.memory_space<vmem>>, %arg2: memref<32x32xf32, #tpu.memory_space<vmem>>, %arg3: memref<1x32xf32, #tpu.memory_space<vmem>>, %arg4: memref<16x32xf32, #tpu.memory_space<vmem>>) attributes {dimension_semantics = [#tpu.dimension_semantics<parallel>], iteration_bounds = array<i64: 1>, scalar_prefetch = 0 : i64, scratch_operands = 0 : i64, tpu.core_type = #tpu.core_type<tc>, window_params = [{transform_indices = @transform_0, window_bounds = array<i64: 16, 32>}, {pipeline_mode = #tpu.pipeline_mode<synchronous>, transform_indices = @transform_1, window_bounds = array<i64: 32, 32>}, {pipeline_mode = #tpu.pipeline_mode<synchronous>, transform_indices = @transform_2, window_bounds = array<i64: 1, 32>}, {transform_indices = @transform_3, window_bounds = array<i64: 16, 32>}]} {
    %c0 = arith.constant 0 : index
    %c0_0 = arith.constant 0 : index
    %0 = vector.load %arg1[%c0, %c0_0] : memref<16x32xf32, #tpu.memory_space<vmem>>, vector<16x32xf32>
    %c0_1 = arith.constant 0 : index
    %c0_2 = arith.constant 0 : index
    %1 = vector.load %arg2[%c0_1, %c0_2] : memref<32x32xf32, #tpu.memory_space<vmem>>, vector<32x32xf32>
    %cst = arith.constant dense<0.000000e+00> : vector<16x32xf32>
    %2 = tpu.matmul %0, %1, %cst {dimension_numbers = #tpu.dot_dimension_numbers<[1], [0], [0], [1], [0, 0, 1, 1], [], []>} : vector<16x32xf32>, vector<32x32xf32>, vector<16x32xf32> -> vector<16x32xf32>
    %c0_3 = arith.constant 0 : index
    %c0_4 = arith.constant 0 : index
    %3 = vector.load %arg3[%c0_3, %c0_4] : memref<1x32xf32, #tpu.memory_space<vmem>>, vector<1x32xf32>
    %4 = vector.broadcast %3 : vector<1x32xf32> to vector<16x32xf32>
    %5 = arith.addf %2, %4 : vector<16x32xf32>
    %c0_5 = arith.constant 0 : index
    %c0_6 = arith.constant 0 : index
    %6 = vector.load %arg4[%c0_5, %c0_6] : memref<16x32xf32, #tpu.memory_space<vmem>>, vector<16x32xf32>
    tpu.vector_store %arg4[%c0_5, %c0_6], %5 {strides = array<i32>} : memref<16x32xf32, #tpu.memory_space<vmem>>, vector<16x32xf32>,
    return
  }
  func.func @transform_0(%arg0: i32) -> (i32, i32) {
    %c0_i32 = arith.constant 0 : i32
    %c0_i32_0 = arith.constant 0 : i32
    return %arg0, %c0_i32 : i32, i32
  }
  func.func @transform_1(%arg0: i32) -> (i32, i32) {
    %c0_i32 = arith.constant 0 : i32
    %c0_i32_0 = arith.constant 0 : i32
    %c0_i32_1 = arith.constant 0 : i32
    return %c0_i32, %c0_i32_0 : i32, i32
  }
  func.func @transform_2(%arg0: i32) -> (i32, i32) {
    %c0_i32 = arith.constant 0 : i32
    %c0_i32_0 = arith.constant 0 : i32
    %c0_i32_1 = arith.constant 0 : i32
    return %c0_i32, %c0_i32_0 : i32, i32
  }
  func.func @transform_3(%arg0: i32) -> (i32, i32) {
    %c0_i32 = arith.constant 0 : i32
    %c0_i32_0 = arith.constant 0 : i32
    return %arg0, %c0_i32 : i32, i32
  }
}

</mosaic_0001>

<llo_original>
// kernel: tpu_custom_call.1
$region0: #{tpu_custom_call.1}
  #allocation0 [shape = 'u32[]', space=smem, size = 0x4, offset = 0x4, fixed_abs, tag = 'smem constant byte address 0x4 - core index']
  #allocation1 [shape = 'u32[72,128]{1,0:T(1,128)}', space=vmem, size = 0x9000, scoped, tag = 'internal scratch']
  %s0 = inlined_call_operand.hbm [shape: f32[16,32], index: 0, kind: input, shape index: {}]
  %s1 = inlined_call_operand.hbm [shape: f32[32,32], index: 1, kind: input, shape index: {}]
  %s2 = inlined_call_operand.vmem [shape: f32[1,32], index: 2, kind: input, shape index: {}]
  %s3 = inlined_call_operand.hbm [shape: f32[16,32], index: 3, kind: output, shape index: {}]
  %s4 = sld [smem:[#allocation0]]
  $region30: #{tpu_custom_call.1} parent=0
    _
  %s6 = ssub.s32 1, %s4
  %s7 = scalar_select 0, %s6, %s4
  $region1: #{tpu_custom_call.1} parent=0
    #allocation2 [shape = 'u8[8192]{0}', space=vmem, size = 0x2000, scoped, tag = 'input window, operand 0, single buffered']
    #allocation3 [shape = 's32[1]{0}', space=sflag, size = 0x4, scoped, tag = 'scoped memory for tpu_custom_call.1']
    #allocation4 [shape = 's32[1]{0}', space=sflag, size = 0x4, scoped, tag = 'scoped memory for tpu_custom_call.1']
    #allocation5 [shape = 'u8[16384]{0}', space=vmem, size = 0x4000, scoped, tag = 'input window, operand 1, single buffered']
    #allocation6 [shape = 's32[1]{0}', space=sflag, size = 0x4, scoped, tag = 'scoped memory for tpu_custom_call.1']
    #allocation7 [shape = 'u8[8192]{0}', space=vmem, size = 0x2000, scoped, tag = 'output window, operand 0, single buffered']
    %8 = vsyncpa [#allocation3], 0
    %9 = vsyncpa [#allocation6], 0
    %10 = vsyncpa [#allocation4], 0
    // Predicated region
    $region2: #{tpu_custom_call.1} parent=1 // pred_check
      _
    $region3: #{tpu_custom_call.1} parent=1 // pred_check_branch
      %12 = sbr.rel (0) target = $region5
    $region4: #{tpu_custom_call.1} parent=1 // pred_region
      %14 = vsyncadd [#allocation3], 0
      %s15 = sshll.u32 %s0, 4
      %s16 = int_to_ptr.hbm [resolvable:$true] %s15
      %s17 = sshll.u32 [#allocation2], 4
      %s18 = int_to_ptr.vmem [resolvable:$true] %s17
      %23 = dma.hbm_to_vmem [thread:$0]  %s16, 256, %s18, [#allocation3], 128, 128, 8
    $region5: #{tpu_custom_call.1} parent=1 // pred_fallthru
      _
    // Predicated region
    $region6: #{tpu_custom_call.1} parent=1 // pred_check
      _
    $region7: #{tpu_custom_call.1} parent=1 // pred_check_branch
      %25 = sbr.rel (0) target = $region9
    $region8: #{tpu_custom_call.1} parent=1 // pred_region
      %27 = vsyncadd [#allocation6], 0
      %s28 = sshll.u32 %s1, 4
      %s29 = int_to_ptr.hbm [resolvable:$true] %s28
      %s30 = sshll.u32 [#allocation5], 4
      %s31 = int_to_ptr.vmem [resolvable:$true] %s30
      %36 = dma.hbm_to_vmem [thread:$0]  %s29, 512, %s31, [#allocation6], 128, 128, 8
    $region9: #{tpu_custom_call.1} parent=1 // pred_fallthru
      _
    // Predicated region
    $region10: #{tpu_custom_call.1} parent=1 // pred_check
      _
    $region11: #{tpu_custom_call.1} parent=1 // pred_check_branch
      %38 = sbr.rel (0) target = $region13
    $region12: #{tpu_custom_call.1} parent=1 // pred_region
      _
    $region13: #{tpu_custom_call.1} parent=1 // pred_fallthru
      _
    // Predicated region
    $region14: #{tpu_custom_call.1} parent=1 // pred_check
      _
    $region15: #{tpu_custom_call.1} parent=1 // pred_check_branch
      %40 = sbr.rel (0) target = $region17
    $region16: #{tpu_custom_call.1} parent=1 // pred_region
      %42 = dma.done [#allocation3], 256
    $region17: #{tpu_custom_call.1} parent=1 // pred_fallthru
      _
    // Predicated region
    $region18: #{tpu_custom_call.1} parent=1 // pred_check
      _
    $region19: #{tpu_custom_call.1} parent=1 // pred_check_branch
      %44 = sbr.rel (0) target = $region21
    $region20: #{tpu_custom_call.1} parent=1 // pred_region
      %46 = dma.done [#allocation6], 512
    $region21: #{tpu_custom_call.1} parent=1 // pred_fallthru
      _
    %v47 = vld [vmem:[#allocation2] sm:$0xff]
    %v48 = vld [vmem:[#allocation2 + $0x8] sm:$0xff]
    %v49 = vld [vmem:[#allocation5] sm:$0xff]
    %v50 = vld [vmem:[#allocation5 + $0x8] sm:$0xff]
    %v51 = vld [vmem:[#allocation5 + $0x10] sm:$0xff]
    %v52 = vld [vmem:[#allocation5 + $0x18] sm:$0xff]
    %v53 = vld [vmem:[%s2] sm:$0x1]
    %v55 = vperm.slane %v53, 0
    %vm57 = vcmask 261120
    %v59 = vsel %vm57, %v47, 0
    %v62 = vsel %vm57, %v48, 0
    %64 = vmatpush.msra.mxu0 0.0
    %65 = vmatpush.msra.mxu0 0.0
    %66 = vmatpush.msra.mxu0 0.0
    %67 = vmatpush.msra.mxu0 0.0
    %68 = vmatpush.msra.mxu0 0.0
    %69 = vmatpush.msra.mxu0 0.0
    %70 = vmatpush.msra.mxu0 0.0
    %71 = vmatpush.msra.mxu0 0.0
    %72 = vmatpush.msra.mxu0 0.0
    %73 = vmatpush.msra.mxu0 0.0
    %74 = vmatpush.msra.mxu0 0.0
    %75 = vmatpush.msra.mxu0 0.0
    %76 = vmatpush.msra.mxu0 %v52
    %77 = vmatpush.msra.mxu0 %v51
    %78 = vmatpush.msra.mxu0 %v50
    %79 = vmatpush.msra.mxu0 %v49
    %80 = vmatmul.f32.gmra.mxu0 %v59
    %v81 = vpop.f32.mrf.mxu0
    %v82 = vadd.f32 %v55, %v81
    %83 = vmatmul.f32.gmra.mxu0 %v62
    %v84 = vpop.f32.mrf.mxu0
    %v85 = vadd.f32 %v55, %v84
    %86 = vdwg.mxu0
    %87 = vst.msk [vmem:[#allocation7] sm:$0xff] %vm57, %v82
    %88 = vst.msk [vmem:[#allocation7 + $0x8] sm:$0xff] %vm57, %v85
    // Predicated region
    $region22: #{tpu_custom_call.1} parent=1 // pred_check
      _
    $region23: #{tpu_custom_call.1} parent=1 // pred_check_branch
      %90 = sbr.rel (0) target = $region25
    $region24: #{tpu_custom_call.1} parent=1 // pred_region
      %92 = vsyncadd [#allocation4], 0
      %s93 = sshll.u32 [#allocation7], 4
      %s94 = int_to_ptr.vmem [resolvable:$true] %s93
      %s95 = sshll.u32 %s3, 4
      %s96 = int_to_ptr.hbm [resolvable:$true] %s95
      %101 = dma.vmem_to_hbm [thread:$0]  %s94, 256, %s96, [#allocation4], 128, 128, 8
    $region25: #{tpu_custom_call.1} parent=1 // pred_fallthru
      _
    // Predicated region
    $region26: #{tpu_custom_call.1} parent=1 // pred_check
      _
    $region27: #{tpu_custom_call.1} parent=1 // pred_check_branch
      %103 = sbr.rel (0) target = $region29
    $region28: #{tpu_custom_call.1} parent=1 // pred_region
      %105 = dma.done [#allocation4], 256
    $region29: #{tpu_custom_call.1} parent=1 // pred_fallthru
      _
    %106 = vsyncpa [#allocation3], 1
    %107 = vsyncpa [#allocation6], 1
    %108 = vsyncpa [#allocation4], 1

// kernel: tpu_custom_call.1
$region0: #{tpu_custom_call.1}
  #allocation0 [shape = 'u32[]', space=smem, size = 0x4, offset = 0x4, fixed_abs, tag = 'smem constant byte address 0x4 - core index']
  #allocation1 [shape = 'u32[72,128]{1,0:T(1,128)}', space=vmem, size = 0x9000, scoped, tag = 'internal scratch']
  %s0 = inlined_call_operand.hbm [shape: f32[16,32], index: 0, kind: input, shape index: {}]
  %s1 = inlined_call_operand.hbm [shape: f32[32,32], index: 1, kind: input, shape index: {}]
  %s2 = inlined_call_operand.vmem [shape: f32[1,32], index: 2, kind: input, shape index: {}]
  %s3 = inlined_call_operand.hbm [shape: f32[16,32], index: 3, kind: output, shape index: {}]
  %s4 = sld [smem:[#allocation0]]
  $region30: #{tpu_custom_call.1} parent=0
    _
  %s6 = ssub.s32 1, %s4
  %s7 = scalar_select 0, %s6, %s4
  $region1: #{tpu_custom_call.1} parent=0
    #allocation2 [shape = 'u8[8192]{0}', space=vmem, size = 0x2000, scoped, tag = 'input window, operand 0, single buffered']
    #allocation3 [shape = 's32[1]{0}', space=sflag, size = 0x4, scoped, tag = 'scoped memory for tpu_custom_call.1']
    #allocation4 [shape = 's32[1]{0}', space=sflag, size = 0x4, scoped, tag = 'scoped memory for tpu_custom_call.1']
    #allocation5 [shape = 'u8[16384]{0}', space=vmem, size = 0x4000, scoped, tag = 'input window, operand 1, single buffered']
    #allocation6 [shape = 's32[1]{0}', space=sflag, size = 0x4, scoped, tag = 'scoped memory for tpu_custom_call.1']
    #allocation7 [shape = 'u8[8192]{0}', space=vmem, size = 0x2000, scoped, tag = 'output window, operand 0, single buffered']
    %8 = vsyncpa [#allocation3], 0
    %9 = vsyncpa [#allocation6], 0
    %10 = vsyncpa [#allocation4], 0
    // Predicated region
    $region2: #{tpu_custom_call.1} parent=1 // pred_check
      _
    $region3: #{tpu_custom_call.1} parent=1 // pred_check_branch
      %12 = sbr.rel (0) target = $region5
    $region4: #{tpu_custom_call.1} parent=1 // pred_region
      %14 = vsyncadd [#allocation3], 0
      %s15 = sshll.u32 %s0, 4
      %s16 = int_to_ptr.hbm [resolvable:$true] %s15
      %s17 = sshll.u32 [#allocation2], 4
      %s18 = int_to_ptr.vmem [resolvable:$true] %s17
      %23 = dma.hbm_to_vmem [thread:$0]  %s16, 256, %s18, [#allocation3], 128, 128, 8
    $region5: #{tpu_custom_call.1} parent=1 // pred_fallthru
      _
    // Predicated region
    $region6: #{tpu_custom_call.1} parent=1 // pred_check
      _
    $region7: #{tpu_custom_call.1} parent=1 // pred_check_branch
      %25 = sbr.rel (0) target = $region9
    $region8: #{tpu_custom_call.1} parent=1 // pred_region
      %27 = vsyncadd [#allocation6], 0
      %s28 = sshll.u32 %s1, 4
      %s29 = int_to_ptr.hbm [resolvable:$true] %s28
      %s30 = sshll.u32 [#allocation5], 4
      %s31 = int_to_ptr.vmem [resolvable:$true] %s30
      %36 = dma.hbm_to_vmem [thread:$0]  %s29, 512, %s31, [#allocation6], 128, 128, 8
    $region9: #{tpu_custom_call.1} parent=1 // pred_fallthru
      _
    // Predicated region
    $region10: #{tpu_custom_call.1} parent=1 // pred_check
      _
    $region11: #{tpu_custom_call.1} parent=1 // pred_check_branch
      %38 = sbr.rel (0) target = $region13
    $region12: #{tpu_custom_call.1} parent=1 // pred_region
      _
    $region13: #{tpu_custom_call.1} parent=1 // pred_fallthru
      _
    // Predicated region
    $region14: #{tpu_custom_call.1} parent=1 // pred_check
      _
    $region15: #{tpu_custom_call.1} parent=1 // pred_check_branch
      %40 = sbr.rel (0) target = $region17
    $region16: #{tpu_custom_call.1} parent=1 // pred_region
      %42 = dma.done [#allocation3], 256
    $region17: #{tpu_custom_call.1} parent=1 // pred_fallthru
      _
    // Predicated region
    $region18: #{tpu_custom_call.1} parent=1 // pred_check
      _
    $region19: #{tpu_custom_call.1} parent=1 // pred_check_branch
      %44 = sbr.rel (0) target = $region21
    $region20: #{tpu_custom_call.1} parent=1 // pred_region
      %46 = dma.done [#allocation6], 512
    $region21: #{tpu_custom_call.1} parent=1 // pred_fallthru
      _
    %v47 = vld [vmem:[#allocation2] sm:$0xff]
    %v48 = vld [vmem:[#allocation2 + $0x8] sm:$0xff]
    %v49 = vld [vmem:[#allocation5] sm:$0xff]
    %v50 = vld [vmem:[#allocation5 + $0x8] sm:$0xff]
    %v51 = vld [vmem:[#allocation5 + $0x10] sm:$0xff]
    %v52 = vld [vmem:[#allocation5 + $0x18] sm:$0xff]
    %v53 = vld [vmem:[%s2] sm:$0x1]
    %v55 = vperm.slane %v53, 0
    %vm57 = vcmask 261120
    %v59 = vsel %vm57, %v47, 0
    %v62 = vsel %vm57, %v48, 0
    %64 = vmatpush.msra.mxu0 0.0
    %65 = vmatpush.msra.mxu0 0.0
    %66 = vmatpush.msra.mxu0 0.0
    %67 = vmatpush.msra.mxu0 0.0
    %68 = vmatpush.msra.mxu0 0.0
    %69 = vmatpush.msra.mxu0 0.0
    %70 = vmatpush.msra.mxu0 0.0
    %71 = vmatpush.msra.mxu0 0.0
    %72 = vmatpush.msra.mxu0 0.0
    %73 = vmatpush.msra.mxu0 0.0
    %74 = vmatpush.msra.mxu0 0.0
    %75 = vmatpush.msra.mxu0 0.0
    %76 = vmatpush.msra.mxu0 %v52
    %77 = vmatpush.msra.mxu0 %v51
    %78 = vmatpush.msra.mxu0 %v50
    %79 = vmatpush.msra.mxu0 %v49
    %80 = vmatmul.f32.gmra.mxu0 %v59
    %v81 = vpop.f32.mrf.mxu0
    %v82 = vadd.f32 %v55, %v81
    %83 = vmatmul.f32.gmra.mxu0 %v62
    %v84 = vpop.f32.mrf.mxu0
    %v85 = vadd.f32 %v55, %v84
    %86 = vdwg.mxu0
    %87 = vst.msk [vmem:[#allocation7] sm:$0xff] %vm57, %v82
    %88 = vst.msk [vmem:[#allocation7 + $0x8] sm:$0xff] %vm57, %v85
    // Predicated region
    $region22: #{tpu_custom_call.1} parent=1 // pred_check
      _
    $region23: #{tpu_custom_call.1} parent=1 // pred_check_branch
      %90 = sbr.rel (0) target = $region25
    $region24: #{tpu_custom_call.1} parent=1 // pred_region
      %92 = vsyncadd [#allocation4], 0
      %s93 = sshll.u32 [#allocation7], 4
      %s94 = int_to_ptr.vmem [resolvable:$true] %s93
      %s95 = sshll.u32 %s3, 4
      %s96 = int_to_ptr.hbm [resolvable:$true] %s95
      %101 = dma.vmem_to_hbm [thread:$0]  %s94, 256, %s96, [#allocation4], 128, 128, 8
    $region25: #{tpu_custom_call.1} parent=1 // pred_fallthru
      _
    // Predicated region
    $region26: #{tpu_custom_call.1} parent=1 // pred_check
      _
    $region27: #{tpu_custom_call.1} parent=1 // pred_check_branch
      %103 = sbr.rel (0) target = $region29
    $region28: #{tpu_custom_call.1} parent=1 // pred_region
      %105 = dma.done [#allocation4], 256
    $region29: #{tpu_custom_call.1} parent=1 // pred_fallthru
      _
    %106 = vsyncpa [#allocation3], 1
    %107 = vsyncpa [#allocation6], 1
    %108 = vsyncpa [#allocation4], 1

</llo_original>
